<compile_context>
chip_gen: v7x
topology: tpu7x:2x2x1
jax: 0.10.0
libtpu: 0.0.40
codegen_flags: <defaults>
</compile_context>

<pallas_src>
import functools

import numpy as np
import jax
import jax.numpy as jnp
from jax.experimental import pallas as pl
from jax.experimental.pallas import tpu as pltpu


def _refl(i, L):
    """PyTorch ReflectionPad index map: valid for i in [-(L-1), 2L-2]."""
    if i < 0:
        return -i
    if i >= L:
        return 2 * (L - 1) - i
    return i


# ----------------------------- fused Pallas kernel ------------------------- #

def _cubic_attention_kernel(x_ref, f1_ref, f2_ref, gamma_ref, beta_ref,
                            col_ref, row_ref, out_ref, *, H, W, K):
    """out = gamma * strip_v(strip_h(x)) + beta * x, lane-dense single block.

    x_ref   : (N*C, H*W)  input, row r = n*C + c, lane l = h*W + w
    f1_ref  : (N*C, K)    per-row sigmoid tap weights of the H-strip
    f2_ref  : (N*C, K)    per-row sigmoid tap weights of the V-strip
    gamma_ref, beta_ref : (N*C, 1)
    col_ref : (1, H*W)    int32, lane % W
    row_ref : (1, H*W)    int32, lane // W
    out_ref : (N*C, H*W)
    """
    p = K // 2
    HW = H * W

    x = x_ref[...].astype(jnp.float32)           # (NC, HW)
    col = col_ref[...]                           # (1, HW)
    row = row_ref[...]                           # (1, HW)

    def shift(t, o):
        # output[l] = t[(l + o) mod HW]  -- pure lane rotation (XLU), no scratch.
        if o == 0:
            return t
        return pltpu.roll(t, (-o) % HW, axis=1)

    def strip(t, filt, length, step, idx):
        # K-tap strip convolution along one spatial axis with reflect boundary.
        #   length: spatial extent of the axis (W or H)
        #   step  : lane stride of that axis (1 for W, W for H)
        #   idx   : (1, HW) per-lane coordinate along the axis
        shifted = {o: shift(t, o * step) for o in range(-p, p + 1)}

        # Boundary masks, shared across taps.
        needed = set()
        for d in range(-p, p + 1):
            if d < 0:
                needed.update(range(0, -d))
            elif d > 0:
                needed.update(range(length - d, length))
        masks = {b: (idx == b) for b in sorted(needed)}

        acc = None
        for k in range(K):
            d = k - p
            tap = shifted[d]
            if d < 0:
                bad = range(0, -d)
            elif d > 0:
                bad = range(length - d, length)
            else:
                bad = range(0)
            for b in bad:
                # Reflected source offset is always within [-p, p]  ->  reuse rolls.
                o = _refl(b + d, length) - b
                tap = jnp.where(masks[b], shifted[o], tap)
            term = filt[:, k:k + 1] * tap        # per-row scalar broadcast over lanes
            acc = term if acc is None else acc + term
        return acc

    acc1 = strip(x, f1_ref[...], W, 1, col)      # H-strip: (1,K) window along W
    acc2 = strip(acc1, f2_ref[...], H, W, row)   # V-strip: (K,1) window along H

    out = gamma_ref[...] * acc2 + beta_ref[...] * x
    out_ref[...] = out.astype(out_ref.dtype)


# ----------------------------- wrapper -------------------------------------- #

def cubic_attention_forward(x, wh, ww, gamma, beta, *, group, kernel):
    """x: (N, C, H, W); wh, ww: (group*kernel, C); gamma, beta: (C,) or (C,1,1)."""
    N, C, H, W = x.shape
    K = kernel
    p = K // 2
    cpg = C // group
    NC, HW = N * C, H * W

    xf = x.astype(jnp.float32)
    whf = wh.reshape(group * K, C).astype(jnp.float32)
    wwf = ww.reshape(group * K, C).astype(jnp.float32)

    # ---- filter generation (AdaptiveAvgPool2d -> 1x1 conv -> Sigmoid) ------
    # Per-(sample, group, tap) scalars only; hoisted to the wrapper so the kernel
    # needs no cross-sublane contractions.  Filter #2 uses the analytic identity
    # mean(strip_h(x)) = sum_k f1[k] * (reflect-count-weighted column sums of x)/HW.
    mean_x = jnp.mean(xf, axis=(2, 3))                           # (N, C)
    f1 = jax.nn.sigmoid(mean_x @ whf.T)                          # (N, G*K)
    f1c = jnp.repeat(f1.reshape(N, group, K), cpg, axis=1)       # (N, C, K)

    cnt = np.zeros((K, W), np.float32)                           # reflect tap counts
    for k in range(K):
        for w in range(W):
            cnt[k, _refl(w + k - p, W)] += 1.0
    colsum = jnp.sum(xf, axis=2)                                 # (N, C, W)
    s = jnp.einsum("ncw,kw->nck", colsum, jnp.asarray(cnt)) / float(HW)
    mean_1 = jnp.sum(f1c * s, axis=-1)                           # (N, C) = mean(strip_h(x))
    f2 = jax.nn.sigmoid(mean_1 @ wwf.T)                          # (N, G*K)
    f2c = jnp.repeat(f2.reshape(N, group, K), cpg, axis=1)       # (N, C, K)

    f1_rows = f1c.reshape(NC, K)
    f2_rows = f2c.reshape(NC, K)

    gamma_col = jnp.tile(gamma.reshape(1, C), (N, 1)).reshape(NC, 1).astype(jnp.float32)
    beta_col = jnp.tile(beta.reshape(1, C), (N, 1)).reshape(NC, 1).astype(jnp.float32)

    col_ids = jnp.asarray((np.arange(HW, dtype=np.int32) % W).reshape(1, HW))
    row_ids = jnp.asarray((np.arange(HW, dtype=np.int32) // W).reshape(1, HW))

    x2d = x.reshape(NC, HW)                                      # lane-dense layout

    kernel_fn = functools.partial(_cubic_attention_kernel, H=H, W=W, K=K)
    out2d = pl.pallas_call(
        kernel_fn,
        out_shape=jax.ShapeDtypeStruct((NC, HW), x.dtype),
        in_specs=[
            pl.BlockSpec((NC, HW), lambda: (0, 0)),   # x
            pl.BlockSpec((NC, K), lambda: (0, 0)),    # H-strip tap weights
            pl.BlockSpec((NC, K), lambda: (0, 0)),    # V-strip tap weights
            pl.BlockSpec((NC, 1), lambda: (0, 0)),    # gamma
            pl.BlockSpec((NC, 1), lambda: (0, 0)),    # beta
            pl.BlockSpec((1, HW), lambda: (0, 0)),    # lane % W
            pl.BlockSpec((1, HW), lambda: (0, 0)),    # lane // W
        ],
        out_specs=pl.BlockSpec((NC, HW), lambda: (0, 0)),
    )(x2d, f1_rows, f2_rows, gamma_col, beta_col, col_ids, row_ids)
    return out2d.reshape(N, C, H, W)


# ----------------------------- pure-JAX reference --------------------------- #
# Mirrors the torch computation (F.unfold-equivalent + grouped filter broadcast).

def _strip_att_ref(x, w_conv, *, group, kernel, horizontal):
    N, C, H, W = x.shape
    K = kernel
    p = K // 2
    cpg = C // group
    mean_c = jnp.mean(x, axis=(2, 3))                        # (N, C)
    filt = jax.nn.sigmoid(mean_c @ w_conv.T)                 # (N, G*K)
    filt = filt.reshape(N, group, 1, K, 1)                   # (N, G, 1, K, 1)
    if horizontal:
        xp = jnp.pad(x, ((0, 0), (0, 0), (0, 0), (p, p)), mode="reflect")
        taps = jnp.stack([xp[:, :, :, j:j + W] for j in range(K)], axis=2)
    else:
        xp = jnp.pad(x, ((0, 0), (0, 0), (p, p), (0, 0)), mode="reflect")
        taps = jnp.stack([xp[:, :, j:j + H, :] for j in range(K)], axis=2)
    taps = taps.reshape(N, group, cpg, K, H * W)             # F.unfold-equivalent
    out = jnp.sum(taps * filt, axis=3)
    return out.reshape(N, C, H, W)


def cubic_attention_ref(x, wh, ww, gamma, beta, *, group, kernel):
    out = _strip_att_ref(x, wh, group=group, kernel=kernel, horizontal=True)
    out = _strip_att_ref(out, ww, group=group, kernel=kernel, horizontal=False)
    C = x.shape[1]
    return gamma.reshape(1, C, 1, 1) * out + beta.reshape(1, C, 1, 1) * x


# ----------------------------- main ----------------------------------------- #

if __name__ == "__main__":
    key = jax.random.PRNGKey(0)
    k1, k2, k3, k4, k5 = jax.random.split(key, 5)

    N, C, H, W = 2, 4, 16, 16
    group, kernel = 2, 5

    x = jax.random.normal(k1, (N, C, H, W), jnp.float32)
    # Conv2d(dim, group*kernel, 1, bias=False) weights: (group*kernel, dim)
    wh = jax.random.normal(k2, (group * kernel, C), jnp.float32) * 0.1
    ww = jax.random.normal(k3, (group * kernel, C), jnp.float32) * 0.1
    # torch init is gamma=zeros / beta=ones (output == x); random values of the same
    # shapes are used so the attention path is actually exercised.
    gamma = jax.random.normal(k4, (C,), jnp.float32) * 0.5
    beta = 1.0 + jax.random.normal(k5, (C,), jnp.float32) * 0.1

    fwd = jax.jit(functools.partial(cubic_attention_forward,
                                    group=group, kernel=kernel))
    out = jax.block_until_ready(fwd(x, wh, ww, gamma, beta))

    ref = cubic_attention_ref(x, wh, ww, gamma, beta, group=group, kernel=kernel)
    assert out.shape == (N, C, H, W)
    max_err = float(jnp.max(jnp.abs(out - ref)))
    assert max_err < 1e-4, max_err

    print("KERNEL_OK")
</pallas_src>

<mosaic_0001>
module attributes {stable_mosaic.version = 11 : i64} {
  func.func @_cubic_attention_kernel(%arg0: memref<8x256xf32, #tpu.memory_space<vmem>>, %arg1: memref<8x5xf32, #tpu.memory_space<vmem>>, %arg2: memref<8x5xf32, #tpu.memory_space<vmem>>, %arg3: memref<8x1xf32, #tpu.memory_space<vmem>>, %arg4: memref<8x1xf32, #tpu.memory_space<vmem>>, %arg5: memref<1x256xi32, #tpu.memory_space<vmem>>, %arg6: memref<1x256xi32, #tpu.memory_space<vmem>>, %arg7: memref<8x256xf32, #tpu.memory_space<vmem>>) attributes {dimension_semantics = [], scalar_prefetch = 0 : i64, scratch_operands = 0 : i64, tpu.core_type = #tpu.core_type<tc>} {
    %c0 = arith.constant 0 : index
    %c0_0 = arith.constant 0 : index
    %0 = vector.load %arg0[%c0, %c0_0] : memref<8x256xf32, #tpu.memory_space<vmem>>, vector<8x256xf32>
    %c0_1 = arith.constant 0 : index
    %c0_2 = arith.constant 0 : index
    %1 = vector.load %arg5[%c0_1, %c0_2] : memref<1x256xi32, #tpu.memory_space<vmem>>, vector<1x256xi32>
    %c0_3 = arith.constant 0 : index
    %c0_4 = arith.constant 0 : index
    %2 = vector.load %arg6[%c0_3, %c0_4] : memref<1x256xi32, #tpu.memory_space<vmem>>, vector<1x256xi32>
    %c0_5 = arith.constant 0 : index
    %c0_6 = arith.constant 0 : index
    %3 = vector.load %arg1[%c0_5, %c0_6] : memref<8x5xf32, #tpu.memory_space<vmem>>, vector<8x5xf32>
    %c2_i32 = arith.constant 2 : i32
    %4 = tpu.dynamic_rotate %0 by %c2_i32 dim 1 : vector<8x256xf32>, i32 -> vector<8x256xf32>
    %c1_i32 = arith.constant 1 : i32
    %5 = tpu.dynamic_rotate %0 by %c1_i32 dim 1 : vector<8x256xf32>, i32 -> vector<8x256xf32>
    %c255_i32 = arith.constant 255 : i32
    %6 = tpu.dynamic_rotate %0 by %c255_i32 dim 1 : vector<8x256xf32>, i32 -> vector<8x256xf32>
    %c254_i32 = arith.constant 254 : i32
    %7 = tpu.dynamic_rotate %0 by %c254_i32 dim 1 : vector<8x256xf32>, i32 -> vector<8x256xf32>
    %c0_i32 = arith.constant 0 : i32
    %8 = vector.broadcast %c0_i32 : i32 to vector<1x256xi32>
    %9 = arith.cmpi eq, %1, %8 : vector<1x256xi32>
    %c1_i32_7 = arith.constant 1 : i32
    %10 = vector.broadcast %c1_i32_7 : i32 to vector<1x256xi32>
    %11 = arith.cmpi eq, %1, %10 : vector<1x256xi32>
    %c14_i32 = arith.constant 14 : i32
    %12 = vector.broadcast %c14_i32 : i32 to vector<1x256xi32>
    %13 = arith.cmpi eq, %1, %12 : vector<1x256xi32>
    %c15_i32 = arith.constant 15 : i32
    %14 = vector.broadcast %c15_i32 : i32 to vector<1x256xi32>
    %15 = arith.cmpi eq, %1, %14 : vector<1x256xi32>
    %16 = vector.shape_cast %9 : vector<1x256xi1> to vector<1x256xi1>
    %17 = vector.broadcast %16 : vector<1x256xi1> to vector<8x256xi1>
    %18 = arith.select %17, %7, %4 : vector<8x256xi1>, vector<8x256xf32>
    %19 = vector.shape_cast %11 : vector<1x256xi1> to vector<1x256xi1>
    %20 = vector.broadcast %19 : vector<1x256xi1> to vector<8x256xi1>
    %21 = arith.select %20, %0, %18 : vector<8x256xi1>, vector<8x256xf32>
    %22 = vector.extract_strided_slice %3 {offsets = [0, 0], sizes = [8, 1], strides = [1, 1]} : vector<8x5xf32> to vector<8x1xf32>
    %23 = vector.broadcast %22 : vector<8x1xf32> to vector<8x256xf32>
    %24 = arith.mulf %23, %21 : vector<8x256xf32>
    %25 = vector.shape_cast %9 : vector<1x256xi1> to vector<1x256xi1>
    %26 = vector.broadcast %25 : vector<1x256xi1> to vector<8x256xi1>
    %27 = arith.select %26, %6, %5 : vector<8x256xi1>, vector<8x256xf32>
    %28 = vector.extract_strided_slice %3 {offsets = [0, 1], sizes = [8, 1], strides = [1, 1]} : vector<8x5xf32> to vector<8x1xf32>
    %29 = vector.broadcast %28 : vector<8x1xf32> to vector<8x256xf32>
    %30 = arith.mulf %29, %27 : vector<8x256xf32>
    %31 = arith.addf %24, %30 : vector<8x256xf32>
    %32 = vector.extract_strided_slice %3 {offsets = [0, 2], sizes = [8, 1], strides = [1, 1]} : vector<8x5xf32> to vector<8x1xf32>
    %33 = vector.broadcast %32 : vector<8x1xf32> to vector<8x256xf32>
    %34 = arith.mulf %33, %0 : vector<8x256xf32>
    %35 = arith.addf %31, %34 : vector<8x256xf32>
    %36 = vector.shape_cast %15 : vector<1x256xi1> to vector<1x256xi1>
    %37 = vector.broadcast %36 : vector<1x256xi1> to vector<8x256xi1>
    %38 = arith.select %37, %5, %6 : vector<8x256xi1>, vector<8x256xf32>
    %39 = vector.extract_strided_slice %3 {offsets = [0, 3], sizes = [8, 1], strides = [1, 1]} : vector<8x5xf32> to vector<8x1xf32>
    %40 = vector.broadcast %39 : vector<8x1xf32> to vector<8x256xf32>
    %41 = arith.mulf %40, %38 : vector<8x256xf32>
    %42 = arith.addf %35, %41 : vector<8x256xf32>
    %43 = vector.shape_cast %13 : vector<1x256xi1> to vector<1x256xi1>
    %44 = vector.broadcast %43 : vector<1x256xi1> to vector<8x256xi1>
    %45 = arith.select %44, %0, %7 : vector<8x256xi1>, vector<8x256xf32>
    %46 = vector.shape_cast %15 : vector<1x256xi1> to vector<1x256xi1>
    %47 = vector.broadcast %46 : vector<1x256xi1> to vector<8x256xi1>
    %48 = arith.select %47, %4, %45 : vector<8x256xi1>, vector<8x256xf32>
    %49 = vector.extract_strided_slice %3 {offsets = [0, 4], sizes = [8, 1], strides = [1, 1]} : vector<8x5xf32> to vector<8x1xf32>
    %50 = vector.broadcast %49 : vector<8x1xf32> to vector<8x256xf32>
    %51 = arith.mulf %50, %48 : vector<8x256xf32>
    %52 = arith.addf %42, %51 : vector<8x256xf32>
    %c0_8 = arith.constant 0 : index
    %c0_9 = arith.constant 0 : index
    %53 = vector.load %arg2[%c0_8, %c0_9] : memref<8x5xf32, #tpu.memory_space<vmem>>, vector<8x5xf32>
    %c32_i32 = arith.constant 32 : i32
    %54 = tpu.dynamic_rotate %52 by %c32_i32 dim 1 : vector<8x256xf32>, i32 -> vector<8x256xf32>
    %c16_i32 = arith.constant 16 : i32
    %55 = tpu.dynamic_rotate %52 by %c16_i32 dim 1 : vector<8x256xf32>, i32 -> vector<8x256xf32>
    %c240_i32 = arith.constant 240 : i32
    %56 = tpu.dynamic_rotate %52 by %c240_i32 dim 1 : vector<8x256xf32>, i32 -> vector<8x256xf32>
    %c224_i32 = arith.constant 224 : i32
    %57 = tpu.dynamic_rotate %52 by %c224_i32 dim 1 : vector<8x256xf32>, i32 -> vector<8x256xf32>
    %c0_i32_10 = arith.constant 0 : i32
    %58 = vector.broadcast %c0_i32_10 : i32 to vector<1x256xi32>
    %59 = arith.cmpi eq, %2, %58 : vector<1x256xi32>
    %c1_i32_11 = arith.constant 1 : i32
    %60 = vector.broadcast %c1_i32_11 : i32 to vector<1x256xi32>
    %61 = arith.cmpi eq, %2, %60 : vector<1x256xi32>
    %c14_i32_12 = arith.constant 14 : i32
    %62 = vector.broadcast %c14_i32_12 : i32 to vector<1x256xi32>
    %63 = arith.cmpi eq, %2, %62 : vector<1x256xi32>
    %c15_i32_13 = arith.constant 15 : i32
    %64 = vector.broadcast %c15_i32_13 : i32 to vector<1x256xi32>
    %65 = arith.cmpi eq, %2, %64 : vector<1x256xi32>
    %66 = vector.shape_cast %59 : vector<1x256xi1> to vector<1x256xi1>
    %67 = vector.broadcast %66 : vector<1x256xi1> to vector<8x256xi1>
    %68 = arith.select %67, %57, %54 : vector<8x256xi1>, vector<8x256xf32>
    %69 = vector.shape_cast %61 : vector<1x256xi1> to vector<1x256xi1>
    %70 = vector.broadcast %69 : vector<1x256xi1> to vector<8x256xi1>
    %71 = arith.select %70, %52, %68 : vector<8x256xi1>, vector<8x256xf32>
    %72 = vector.extract_strided_slice %53 {offsets = [0, 0], sizes = [8, 1], strides = [1, 1]} : vector<8x5xf32> to vector<8x1xf32>
    %73 = vector.broadcast %72 : vector<8x1xf32> to vector<8x256xf32>
    %74 = arith.mulf %73, %71 : vector<8x256xf32>
    %75 = vector.shape_cast %59 : vector<1x256xi1> to vector<1x256xi1>
    %76 = vector.broadcast %75 : vector<1x256xi1> to vector<8x256xi1>
    %77 = arith.select %76, %56, %55 : vector<8x256xi1>, vector<8x256xf32>
    %78 = vector.extract_strided_slice %53 {offsets = [0, 1], sizes = [8, 1], strides = [1, 1]} : vector<8x5xf32> to vector<8x1xf32>
    %79 = vector.broadcast %78 : vector<8x1xf32> to vector<8x256xf32>
    %80 = arith.mulf %79, %77 : vector<8x256xf32>
    %81 = arith.addf %74, %80 : vector<8x256xf32>
    %82 = vector.extract_strided_slice %53 {offsets = [0, 2], sizes = [8, 1], strides = [1, 1]} : vector<8x5xf32> to vector<8x1xf32>
    %83 = vector.broadcast %82 : vector<8x1xf32> to vector<8x256xf32>
    %84 = arith.mulf %83, %52 : vector<8x256xf32>
    %85 = arith.addf %81, %84 : vector<8x256xf32>
    %86 = vector.shape_cast %65 : vector<1x256xi1> to vector<1x256xi1>
    %87 = vector.broadcast %86 : vector<1x256xi1> to vector<8x256xi1>
    %88 = arith.select %87, %55, %56 : vector<8x256xi1>, vector<8x256xf32>
    %89 = vector.extract_strided_slice %53 {offsets = [0, 3], sizes = [8, 1], strides = [1, 1]} : vector<8x5xf32> to vector<8x1xf32>
    %90 = vector.broadcast %89 : vector<8x1xf32> to vector<8x256xf32>
    %91 = arith.mulf %90, %88 : vector<8x256xf32>
    %92 = arith.addf %85, %91 : vector<8x256xf32>
    %93 = vector.shape_cast %63 : vector<1x256xi1> to vector<1x256xi1>
    %94 = vector.broadcast %93 : vector<1x256xi1> to vector<8x256xi1>
    %95 = arith.select %94, %52, %57 : vector<8x256xi1>, vector<8x256xf32>
    %96 = vector.shape_cast %65 : vector<1x256xi1> to vector<1x256xi1>
    %97 = vector.broadcast %96 : vector<1x256xi1> to vector<8x256xi1>
    %98 = arith.select %97, %54, %95 : vector<8x256xi1>, vector<8x256xf32>
    %99 = vector.extract_strided_slice %53 {offsets = [0, 4], sizes = [8, 1], strides = [1, 1]} : vector<8x5xf32> to vector<8x1xf32>
    %100 = vector.broadcast %99 : vector<8x1xf32> to vector<8x256xf32>
    %101 = arith.mulf %100, %98 : vector<8x256xf32>
    %102 = arith.addf %92, %101 : vector<8x256xf32>
    %c0_14 = arith.constant 0 : index
    %c0_15 = arith.constant 0 : index
    %103 = vector.load %arg3[%c0_14, %c0_15] : memref<8x1xf32, #tpu.memory_space<vmem>>, vector<8x1xf32>
    %104 = vector.broadcast %103 : vector<8x1xf32> to vector<8x256xf32>
    %105 = arith.mulf %104, %102 : vector<8x256xf32>
    %c0_16 = arith.constant 0 : index
    %c0_17 = arith.constant 0 : index
    %106 = vector.load %arg4[%c0_16, %c0_17] : memref<8x1xf32, #tpu.memory_space<vmem>>, vector<8x1xf32>
    %107 = vector.broadcast %106 : vector<8x1xf32> to vector<8x256xf32>
    %108 = arith.mulf %107, %0 : vector<8x256xf32>
    %109 = arith.addf %105, %108 : vector<8x256xf32>
    %c0_18 = arith.constant 0 : index
    %c0_19 = arith.constant 0 : index
    %110 = vector.load %arg7[%c0_18, %c0_19] : memref<8x256xf32, #tpu.memory_space<vmem>>, vector<8x256xf32>
    tpu.vector_store %arg7[%c0_18, %c0_19], %109 {strides = array<i32>} : memref<8x256xf32, #tpu.memory_space<vmem>>, vector<8x256xf32>,
    return
  }
}

</mosaic_0001>

<llo_original>
// kernel: tile.10
$region0: #{tile.10}
  #allocation0 [shape = 's32[1]{0}', space=sflag, size = 0x4, scoped, tag = 'scoped memory for tile.10']
  %s0 = inlined_call_operand.vmem [shape: f32[4], index: 0, kind: input, shape index: {}]
  %s1 = inlined_call_operand.vmem [shape: f32[2,1,1,4], index: 1, kind: output, shape index: {}]
  // Predicated region
  $region2: #{tile.10} parent=0 // pred_check
    _
  $region3: #{tile.10} parent=0 // pred_check_branch
    %3 = sbr.rel (0) target = $region5
  $region4: #{tile.10} parent=0 // pred_region
    _
  $region5: #{tile.10} parent=0 // pred_fallthru
    _
  %v4 = vld [vmem:[%s0] ss:$0 sm:$0xff]
  %5 = vst [vmem:[%s1] sm:$0x3] %v4

// kernel: tile.1
$region0: #{tile.1}
  %s0 = inlined_call_operand.vmem [shape: f32[2,1,1,4], index: 0, kind: input, shape index: {}]
  %s1 = inlined_call_operand.vmem [shape: f32[8,1], index: 1, kind: output, shape index: {}]
  $region1: #{tile.1} parent=0
    #allocation0 [shape = 'u8[4096]{0}', space=vmem, size = 0x1000, scoped, tag = 'scoped mem for input reshape']
    %s3 = sshllo.u32 0, 2
    %v4 = vld [vmem:[%s0] sm:%s3]
    %5 = vst [vmem:[#allocation0] sm:%s3] %v4
    %v6 = vld [vmem:[#allocation0] sm:$0x3]
    %vm7 = vcmask 7168
    %8 = vst.msk [vmem:[%s1] ss:$4 sm:$0x3] %vm7, %v6
    %v9 = vld [vmem:[#allocation0] sm:$0x3]
    %10 = vrot.lane.b32.xlu0 %v9, 127
    %v11 = vpop.permute.xlu0 %10
    %vm12 = vcmask 7168
    %s13 = scalar_lea.vmem %s1, 1
    %14 = vst.msk [vmem:[%s13] ss:$4 sm:$0x3] %vm12, %v11
    %v15 = vld [vmem:[#allocation0] sm:$0x3]
    %16 = vrot.lane.b32.xlu0 %v15, 126
    %v17 = vpop.permute.xlu0 %16
    %vm18 = vcmask 7168
    %s19 = scalar_lea.vmem %s1, 2
    %20 = vst.msk [vmem:[%s19] ss:$4 sm:$0x3] %vm18, %v17
    %v21 = vld [vmem:[#allocation0] sm:$0x3]
    %22 = vrot.lane.b32.xlu0 %v21, 125
    %v23 = vpop.permute.xlu0 %22
    %vm24 = vcmask 7168
    %s25 = scalar_lea.vmem %s1, 3
    %26 = vst.msk [vmem:[%s25] ss:$4 sm:$0x3] %vm24, %v23

// kernel: cubic_attention_forward.1
$region0: #{cubic_attention_forward.1}
  #allocation0 [shape = 'u32[]', space=smem, size = 0x4, offset = 0x4, fixed_abs, tag = 'smem constant byte address 0x4 - core index']
  #allocation1 [shape = 'u32[144,128]{1,0:T(1,128)}', space=vmem, size = 0x12000, scoped, tag = 'internal scratch']
  %s0 = inlined_call_operand.vmem [shape: f32[8,256], index: 0, kind: input, shape index: {}]
  %s1 = inlined_call_operand.vmem [shape: f32[8,5], index: 1, kind: input, shape index: {}]
  %s2 = inlined_call_operand.vmem [shape: f32[8,5], index: 2, kind: input, shape index: {}]
  %s3 = inlined_call_operand.vmem [shape: f32[8,1], index: 3, kind: input, shape index: {}]
  %s4 = inlined_call_operand.vmem [shape: f32[8,1], index: 4, kind: input, shape index: {}]
  %s5 = inlined_call_operand.vmem [shape: s32[1,256], index: 5, kind: input, shape index: {}]
  %s6 = inlined_call_operand.vmem [shape: s32[1,256], index: 6, kind: input, shape index: {}]
  %s7 = inlined_call_operand.vmem [shape: f32[8,256], index: 7, kind: output, shape index: {}]
  %s8 = sld [smem:[#allocation0]]
  $region38: #{cubic_attention_forward.1} parent=0
    _
  %s10 = ssub.s32 1, %s8
  %s11 = scalar_select 0, %s10, %s8
  // Predicated region
  $region2: #{cubic_attention_forward.1} parent=0 // pred_check
    _
  $region3: #{cubic_attention_forward.1} parent=0 // pred_check_branch
    %13 = sbr.rel (0) target = $region5
  $region4: #{cubic_attention_forward.1} parent=0 // pred_region
    _
  $region5: #{cubic_attention_forward.1} parent=0 // pred_fallthru
    _
  // Predicated region
  $region6: #{cubic_attention_forward.1} parent=0 // pred_check
    _
  $region7: #{cubic_attention_forward.1} parent=0 // pred_check_branch
    %15 = sbr.rel (0) target = $region9
  $region8: #{cubic_attention_forward.1} parent=0 // pred_region
    _
  $region9: #{cubic_attention_forward.1} parent=0 // pred_fallthru
    _
  // Predicated region
  $region10: #{cubic_attention_forward.1} parent=0 // pred_check
    _
  $region11: #{cubic_attention_forward.1} parent=0 // pred_check_branch
    %17 = sbr.rel (0) target = $region13
  $region12: #{cubic_attention_forward.1} parent=0 // pred_region
    _
  $region13: #{cubic_attention_forward.1} parent=0 // pred_fallthru
    _
  // Predicated region
  $region14: #{cubic_attention_forward.1} parent=0 // pred_check
    _
  $region15: #{cubic_attention_forward.1} parent=0 // pred_check_branch
    %19 = sbr.rel (0) target = $region17
  $region16: #{cubic_attention_forward.1} parent=0 // pred_region
    _
  $region17: #{cubic_attention_forward.1} parent=0 // pred_fallthru
    _
  // Predicated region
  $region18: #{cubic_attention_forward.1} parent=0 // pred_check
    _
  $region19: #{cubic_attention_forward.1} parent=0 // pred_check_branch
    %21 = sbr.rel (0) target = $region21
  $region20: #{cubic_attention_forward.1} parent=0 // pred_region
    _
  $region21: #{cubic_attention_forward.1} parent=0 // pred_fallthru
    _
  // Predicated region
  $region22: #{cubic_attention_forward.1} parent=0 // pred_check
    _
  $region23: #{cubic_attention_forward.1} parent=0 // pred_check_branch
    %23 = sbr.rel (0) target = $region25
  $region24: #{cubic_attention_forward.1} parent=0 // pred_region
    _
  $region25: #{cubic_attention_forward.1} parent=0 // pred_fallthru
    _
  // Predicated region
  $region26: #{cubic_attention_forward.1} parent=0 // pred_check
    _
  $region27: #{cubic_attention_forward.1} parent=0 // pred_check_branch
    %25 = sbr.rel (0) target = $region29
  $region28: #{cubic_attention_forward.1} parent=0 // pred_region
    _
  $region29: #{cubic_attention_forward.1} parent=0 // pred_fallthru
    _
  %v26 = vld [vmem:[%s0] sm:$0xff]
  %v27 = vld [vmem:[%s0 + $0x8] sm:$0xff]
  %v28 = vld [vmem:[%s5] sm:$0x3]
  %v29 = vld [vmem:[%s6] sm:$0x3]
  %v30 = vld [vmem:[%s1] sm:$0xff]
  %31 = vrot.lane.b32.xlu0 %v26, 2
  %v32 = vpop.permute.xlu0 %31
  %33 = vrot.lane.b32.xlu0 %v27, 2
  %v34 = vpop.permute.xlu0 %33
  %v35 = vlaneseq
  %v36 = vand.u32 %v35, 127
  %vm37 = vcmp.lt.s32.totalorder %v36, 2
  %v38 = vsel %vm37, %v32, %v34
  %v39 = vsel %vm37, %v34, %v32
  %40 = vrot.lane.b32.xlu0 %v26, 1
  %v41 = vpop.permute.xlu0 %40
  %42 = vrot.lane.b32.xlu0 %v27, 1
  %v43 = vpop.permute.xlu0 %42
  %vm44 = vcmp.lt.s32.totalorder %v36, 1
  %v45 = vsel %vm44, %v41, %v43
  %v46 = vsel %vm44, %v43, %v41
  %47 = vrot.lane.b32.xlu0 %v26, 127
  %v48 = vpop.permute.xlu0 %47
  %49 = vrot.lane.b32.xlu0 %v27, 127
  %v50 = vpop.permute.xlu0 %49
  %vm51 = vcmp.lt.s32.totalorder %v36, 127
  %v52 = vsel %vm51, %v48, %v50
  %v53 = vsel %vm51, %v50, %v48
  %54 = vrot.lane.b32.xlu0 %v26, 126
  %v55 = vpop.permute.xlu0 %54
  %56 = vrot.lane.b32.xlu0 %v27, 126
  %v57 = vpop.permute.xlu0 %56
  %vm58 = vcmp.lt.s32.totalorder %v36, 126
  %v59 = vsel %vm58, %v55, %v57
  %v60 = vsel %vm58, %v57, %v55
  %vm61 = vcmp.eq.s32.totalorder %v28, 0
  %vm62 = vcmp.eq.s32.totalorder %v28, 1
  %vm63 = vcmp.eq.s32.totalorder %v28, 14
  %vm64 = vcmp.eq.s32.totalorder %v28, 15
  %v65 = vsel %vm61, 1, 0
  %v66 = vlaneseq
  %v67 = vshrl.u32 %v66, 7
  %v68 = vsub.s32 0, %v67
  %v69 = vrot.slane %v65, %v68
  %v70 = vlaneseq
  %v71 = vshrl.u32 %v70, 7
  %v72 = vsub.s32 1, %v71
  %v73 = vrot.slane %v65, %v72
  %vm74 = vcmp.eq.s32.totalorder %v69, 1
  %vm75 = vcmp.eq.s32.totalorder %v73, 1
  %v76 = vsel %vm74, %v59, %v39
  %v77 = vsel %vm75, %v60, %v38
  %v78 = vsel %vm62, 1, 0
  %v79 = vlaneseq
  %v80 = vshrl.u32 %v79, 7
  %v81 = vsub.s32 0, %v80
  %v82 = vrot.slane %v78, %v81
  %v83 = vlaneseq
  %v84 = vshrl.u32 %v83, 7
  %v85 = vsub.s32 1, %v84
  %v86 = vrot.slane %v78, %v85
  %vm87 = vcmp.eq.s32.totalorder %v82, 1
  %vm88 = vcmp.eq.s32.totalorder %v86, 1
  %v89 = vsel %vm87, %v26, %v76
  %v90 = vsel %vm88, %v27, %v77
  %92 = vset.pattern.permute.xlu0 0
  %93 = vperm.xlu0 %92, %v30
  %v94 = vpop.permute.xlu0 %93
  %v96 = vmul.f32 %v94, %v89
  %v97 = vmul.f32 %v94, %v90
  %v98 = vsel %vm74, %v52, %v46
  %v99 = vsel %vm75, %v53, %v45
  %100 = vset.pattern.permute.xlu0 1
  %101 = vperm.xlu0 %100, %v30
  %v102 = vpop.permute.xlu0 %101
  %v104 = vmul.f32 %v102, %v98
  %v105 = vmul.f32 %v102, %v99
  %v106 = vadd.f32 %v96, %v104
  %v107 = vadd.f32 %v97, %v105
  %108 = vset.pattern.permute.xlu0 2
  %109 = vperm.xlu0 %108, %v30
  %v110 = vpop.permute.xlu0 %109
  %v112 = vmul.f32 %v110, %v26
  %v113 = vmul.f32 %v110, %v27
  %v114 = vadd.f32 %v106, %v112
  %v115 = vadd.f32 %v107, %v113
  %v116 = vsel %vm64, 1, 0
  %v117 = vlaneseq
  %v118 = vshrl.u32 %v117, 7
  %v119 = vsub.s32 0, %v118
  %v120 = vrot.slane %v116, %v119
  %v121 = vlaneseq
  %v122 = vshrl.u32 %v121, 7
  %v123 = vsub.s32 1, %v122
  %v124 = vrot.slane %v116, %v123
  %vm125 = vcmp.eq.s32.totalorder %v120, 1
  %vm126 = vcmp.eq.s32.totalorder %v124, 1
  %v127 = vsel %vm125, %v46, %v52
  %v128 = vsel %vm126, %v45, %v53
  %129 = vset.pattern.permute.xlu0 3
  %130 = vperm.xlu0 %129, %v30
  %v131 = vpop.permute.xlu0 %130
  %v133 = vmul.f32 %v131, %v127
  %v134 = vmul.f32 %v131, %v128
  %v135 = vadd.f32 %v114, %v133
  %v136 = vadd.f32 %v115, %v134
  %v137 = vsel %vm63, 1, 0
  %v138 = vlaneseq
  %v139 = vshrl.u32 %v138, 7
  %v140 = vsub.s32 0, %v139
  %v141 = vrot.slane %v137, %v140
  %v142 = vlaneseq
  %v143 = vshrl.u32 %v142, 7
  %v144 = vsub.s32 1, %v143
  %v145 = vrot.slane %v137, %v144
  %vm146 = vcmp.eq.s32.totalorder %v141, 1
  %vm147 = vcmp.eq.s32.totalorder %v145, 1
  %v148 = vsel %vm146, %v26, %v59
  %v149 = vsel %vm147, %v27, %v60
  %v150 = vsel %vm125, %v39, %v148
  %v151 = vsel %vm126, %v38, %v149
  %152 = vset.pattern.permute.xlu0 4
  %153 = vperm.xlu0 %152, %v30
  %v154 = vpop.permute.xlu0 %153
  %v156 = vmul.f32 %v154, %v150
  %v157 = vmul.f32 %v154, %v151
  %v158 = vadd.f32 %v135, %v156
  %v159 = vadd.f32 %v136, %v157
  %v160 = vld [vmem:[%s2] sm:$0xff]
  %161 = vrot.lane.b32.xlu0 %v158, 32
  %v162 = vpop.permute.xlu0 %161
  %163 = vrot.lane.b32.xlu0 %v159, 32
  %v164 = vpop.permute.xlu0 %163
  %vm165 = vcmp.lt.s32.totalorder %v36, 32
  %v166 = vsel %vm165, %v162, %v164
  %v167 = vsel %vm165, %v164, %v162
  %168 = vrot.lane.b32.xlu0 %v158, 16
  %v169 = vpop.permute.xlu0 %168
  %170 = vrot.lane.b32.xlu0 %v159, 16
  %v171 = vpop.permute.xlu0 %170
  %vm172 = vcmp.lt.s32.totalorder %v36, 16
  %v173 = vsel %vm172, %v169, %v171
  %v174 = vsel %vm172, %v171, %v169
  %175 = vrot.lane.b32.xlu0 %v158, 112
  %v176 = vpop.permute.xlu0 %175
  %177 = vrot.lane.b32.xlu0 %v159, 112
  %v178 = vpop.permute.xlu0 %177
  %vm179 = vcmp.lt.s32.totalorder %v36, 112
  %v180 = vsel %vm179, %v176, %v178
  %v181 = vsel %vm179, %v178, %v176
  %182 = vrot.lane.b32.xlu0 %v158, 96
  %v183 = vpop.permute.xlu0 %182
  %184 = vrot.lane.b32.xlu0 %v159, 96
  %v185 = vpop.permute.xlu0 %184
  %vm186 = vcmp.lt.s32.totalorder %v36, 96
  %v187 = vsel %vm186, %v183, %v185
  %v188 = vsel %vm186, %v185, %v183
  %vm189 = vcmp.eq.s32.totalorder %v29, 0
  %vm190 = vcmp.eq.s32.totalorder %v29, 1
  %vm191 = vcmp.eq.s32.totalorder %v29, 14
  %vm192 = vcmp.eq.s32.totalorder %v29, 15
  %v193 = vsel %vm189, 1, 0
  %v194 = vlaneseq
  %v195 = vshrl.u32 %v194, 7
  %v196 = vsub.s32 0, %v195
  %v197 = vrot.slane %v193, %v196
  %v198 = vlaneseq
  %v199 = vshrl.u32 %v198, 7
  %v200 = vsub.s32 1, %v199
  %v201 = vrot.slane %v193, %v200
  %vm202 = vcmp.eq.s32.totalorder %v197, 1
  %vm203 = vcmp.eq.s32.totalorder %v201, 1
  %v204 = vsel %vm202, %v187, %v167
  %v205 = vsel %vm203, %v188, %v166
  %v206 = vsel %vm190, 1, 0
  %v207 = vlaneseq
  %v208 = vshrl.u32 %v207, 7
  %v209 = vsub.s32 0, %v208
  %v210 = vrot.slane %v206, %v209
  %v211 = vlaneseq
  %v212 = vshrl.u32 %v211, 7
  %v213 = vsub.s32 1, %v212
  %v214 = vrot.slane %v206, %v213
  %vm215 = vcmp.eq.s32.totalorder %v210, 1
  %vm216 = vcmp.eq.s32.totalorder %v214, 1
  %v217 = vsel %vm215, %v158, %v204
  %v218 = vsel %vm216, %v159, %v205
  %220 = vset.pattern.permute.xlu0 0
  %221 = vperm.xlu0 %220, %v160
  %v222 = vpop.permute.xlu0 %221
  %v224 = vmul.f32 %v222, %v217
  %v225 = vmul.f32 %v222, %v218
  %v226 = vsel %vm202, %v180, %v174
  %v227 = vsel %vm203, %v181, %v173
  %228 = vset.pattern.permute.xlu0 1
  %229 = vperm.xlu0 %228, %v160
  %v230 = vpop.permute.xlu0 %229
  %v232 = vmul.f32 %v230, %v226
  %v233 = vmul.f32 %v230, %v227
  %v234 = vadd.f32 %v224, %v232
  %v235 = vadd.f32 %v225, %v233
  %236 = vset.pattern.permute.xlu0 2
  %237 = vperm.xlu0 %236, %v160
  %v238 = vpop.permute.xlu0 %237
  %v240 = vmul.f32 %v238, %v158
  %v241 = vmul.f32 %v238, %v159
  %v242 = vadd.f32 %v234, %v240
  %v243 = vadd.f32 %v235, %v241
  %v244 = vsel %vm192, 1, 0
  %v245 = vlaneseq
  %v246 = vshrl.u32 %v245, 7
  %v247 = vsub.s32 0, %v246
  %v248 = vrot.slane %v244, %v247
  %v249 = vlaneseq
  %v250 = vshrl.u32 %v249, 7
  %v251 = vsub.s32 1, %v250
  %v252 = vrot.slane %v244, %v251
  %vm253 = vcmp.eq.s32.totalorder %v248, 1
  %vm254 = vcmp.eq.s32.totalorder %v252, 1
  %v255 = vsel %vm253, %v174, %v180
  %v256 = vsel %vm254, %v173, %v181
  %257 = vset.pattern.permute.xlu0 3
  %258 = vperm.xlu0 %257, %v160
  %v259 = vpop.permute.xlu0 %258
  %v261 = vmul.f32 %v259, %v255
  %v262 = vmul.f32 %v259, %v256
  %v263 = vadd.f32 %v242, %v261
  %v264 = vadd.f32 %v243, %v262
  %v265 = vsel %vm191, 1, 0
  %v266 = vlaneseq
  %v267 = vshrl.u32 %v266, 7
  %v268 = vsub.s32 0, %v267
  %v269 = vrot.slane %v265, %v268
  %v270 = vlaneseq
  %v271 = vshrl.u32 %v270, 7
  %v272 = vsub.s32 1, %v271
  %v273 = vrot.slane %v265, %v272
  %vm274 = vcmp.eq.s32.totalorder %v269, 1
  %vm275 = vcmp.eq.s32.totalorder %v273, 1
  %v276 = vsel %vm274, %v158, %v187
  %v277 = vsel %vm275, %v159, %v188
  %v278 = vsel %vm253, %v167, %v276
  %v279 = vsel %vm254, %v166, %v277
  %280 = vset.pattern.permute.xlu0 4
  %281 = vperm.xlu0 %280, %v160
  %v282 = vpop.permute.xlu0 %281
  %v284 = vmul.f32 %v282, %v278
  %v285 = vmul.f32 %v282, %v279
  %v286 = vadd.f32 %v263, %v284
  %v287 = vadd.f32 %v264, %v285
  %v288 = vld [vmem:[%s3] sm:$0xff]
  %290 = vset.pattern.permute.xlu0 0
  %291 = vperm.xlu0 %290, %v288
  %v292 = vpop.permute.xlu0 %291
  %v294 = vmul.f32 %v292, %v286
  %v295 = vmul.f32 %v292, %v287
  %v296 = vld [vmem:[%s4] sm:$0xff]
  %298 = vset.pattern.permute.xlu0 0
  %299 = vperm.xlu0 %298, %v296
  %v300 = vpop.permute.xlu0 %299
  %v302 = vmul.f32 %v300, %v26
  %v303 = vmul.f32 %v300, %v27
  %v304 = vadd.f32 %v294, %v302
  %v305 = vadd.f32 %v295, %v303
  %306 = vst [vmem:[%s7] sm:$0xff] %v304
  %307 = vst [vmem:[%s7 + $0x8] sm:$0xff] %v305
  // Predicated region
  $region30: #{cubic_attention_forward.1} parent=0 // pred_check
    _
  $region31: #{cubic_attention_forward.1} parent=0 // pred_check_branch
    %309 = sbr.rel (0) target = $region33
  $region32: #{cubic_attention_forward.1} parent=0 // pred_region
    _
  $region33: #{cubic_attention_forward.1} parent=0 // pred_fallthru
    _
  // Predicated region
  $region34: #{cubic_attention_forward.1} parent=0 // pred_check
    _
  $region35: #{cubic_attention_forward.1} parent=0 // pred_check_branch
    %311 = sbr.rel (0) target = $region37
  $region36: #{cubic_attention_forward.1} parent=0 // pred_region
    _
  $region37: #{cubic_attention_forward.1} parent=0 // pred_fallthru
    _

</llo_original>
